<compile_context>
chip_gen: v5e
topology: v5e:2x2
jax: 0.10.0
libtpu: 0.0.40
codegen_flags: <defaults>
</compile_context>

<pallas_src>
import numpy as np
import jax
import jax.numpy as jnp
from jax.experimental import pallas as pl
from jax.experimental.pallas import tpu as pltpu


# ----------------------------------------------------------------------------
# Kernels
# ----------------------------------------------------------------------------
def _w1_kernel(msg_ref, w1t_ref, h0_ref, hbf_ref):
    """h0 = ReLU(init_msg @ W1^T); also emit a bf16 copy for the MP loop."""
    h0 = jnp.maximum(
        jnp.dot(msg_ref[...], w1t_ref[...], preferred_element_type=jnp.float32),
        0.0)
    h0_ref[...] = h0
    hbf_ref[...] = h0.astype(jnp.bfloat16)


def _mp_step_kernel(amr_ref, h_ref, h0_ref, w2t_ref, hnew_ref):
    """One directed message-passing iteration for a tile of edge rows.

    m = (A - R)[rows, :] @ h         (bf16 x bf16 -> f32 on MXU, streamed AmR)
    h_new[rows] = ReLU(h0[rows] + m @ W2^T)
    """
    m = jnp.dot(amr_ref[...], h_ref[...], preferred_element_type=jnp.float32)
    hn = jnp.maximum(
        h0_ref[...] + jnp.dot(m, w2t_ref[...], preferred_element_type=jnp.float32),
        0.0)
    hnew_ref[...] = hn.astype(jnp.bfloat16)


def _readout_kernel(bagg_ref, h_ref, x_ref, w3xt_ref, w3vt_ref, b3_ref,
                    poolt_ref, out_ref):
    """Per node-row tile: v_msg, node_attr, and accumulate Pool @ node_attr."""
    @pl.when(pl.program_id(0) == 0)
    def _():
        out_ref[...] = jnp.zeros_like(out_ref)

    v = jnp.dot(bagg_ref[...], h_ref[...], preferred_element_type=jnp.float32)
    na = jnp.maximum(
        jnp.dot(x_ref[...], w3xt_ref[...], preferred_element_type=jnp.float32)
        + jnp.dot(v, w3vt_ref[...], preferred_element_type=jnp.float32)
        + b3_ref[...],
        0.0)
    # out += Pool[:, tile]^T-free form: contract the node-tile axis directly.
    out_ref[...] += jax.lax.dot_general(
        poolt_ref[...], na, (((0,), (0,)), ((), ())),
        preferred_element_type=jnp.float32)


# ----------------------------------------------------------------------------
# Wrapper
# ----------------------------------------------------------------------------
def _round_up(a, b):
    return ((a + b - 1) // b) * b


def dmpnn_forward_pallas(x, edge_index, revedge_index, edge_attr, batch,
                         num_graphs, params, depth=3, tile_e=256, tile_n=128):
    W1, W2, W3, b3 = params            # torch nn.Linear weight shapes: [out, in]
    f32, bf16 = jnp.float32, jnp.bfloat16
    x = x.astype(f32)
    edge_attr = edge_attr.astype(f32)

    N, node_fdim = x.shape
    E = edge_index.shape[1]
    edge_fdim = edge_attr.shape[1]
    H = W1.shape[0]
    Fin = node_fdim + edge_fdim

    # Padded, lane-dense sizes (review: pad H / outputs / features to 128).
    Hp = _round_up(H, 128)
    Fp = _round_up(Fin, 128)
    Fxp = _round_up(node_fdim, 128)
    Ep = _round_up(E, tile_e)
    Np = _round_up(N, tile_n)
    Gp = _round_up(num_graphs, 8)
    nE = Ep // tile_e
    nN = Np // tile_n

    src, dst = edge_index[0], edge_index[1]
    # Padded index arrays; sentinels never match any real index.
    src_p = jnp.concatenate([src, jnp.full((Ep - E,), -1, src.dtype)])
    dst_p = jnp.concatenate([dst, jnp.full((Ep - E,), -2, dst.dtype)])
    rev_p = jnp.concatenate(
        [revedge_index, jnp.full((Ep - E,), -1, revedge_index.dtype)])

    # init_msg = cat([x[src], edge_attr], dim=1), zero-padded & lane-dense.
    init_msg = jnp.concatenate([x[src], edge_attr], axis=1)              # [E, Fin]
    init_msg_p = jnp.zeros((Ep, Fp), f32).at[:E, :Fin].set(init_msg)

    # Dense graph operators in bf16 (entries exactly representable).
    A = (dst_p[None, :] == src_p[:, None]).astype(f32)                   # [Ep, Ep]
    R = jax.nn.one_hot(rev_p, Ep, dtype=f32)
    AmR = (A - R).astype(bf16)                                           # {-1,0,1}
    Bagg = (dst_p[None, :] == jnp.arange(Np)[:, None]).astype(bf16)      # [Np, Ep]

    # Global mean pool operator (rows sum to 1), kept in f32, transposed so
    # the node-tile axis is the leading (tileable) axis: PoolT [Np, Gp].
    onehot_gn = jax.nn.one_hot(batch, num_graphs, dtype=f32).T           # [G, N]
    counts = jnp.maximum(onehot_gn.sum(axis=1, keepdims=True), 1.0)
    pool = onehot_gn / counts
    poolT = jnp.zeros((Np, Gp), f32).at[:N, :num_graphs].set(pool.T)

    xp = jnp.zeros((Np, Fxp), f32).at[:N, :node_fdim].set(x)

    # Padded, pre-transposed weights (f32; tiny).
    W1t = jnp.zeros((Fp, Hp), f32).at[:Fin, :H].set(W1.T)
    W2t = jnp.zeros((Hp, Hp), f32).at[:H, :H].set(W2.T)
    W3xt = jnp.zeros((Fxp, Hp), f32).at[:node_fdim, :H].set(W3[:, :node_fdim].T)
    W3vt = jnp.zeros((Hp, Hp), f32).at[:H, :H].set(W3[:, node_fdim:].T)
    b3p = jnp.zeros((1, Hp), f32).at[0, :H].set(b3)

    vmem_limit = 48 * 1024 * 1024   # safe on v5e/v6e/v7x, above scoped defaults
    cp_par = pltpu.CompilerParams(dimension_semantics=("parallel",),
                                  vmem_limit_bytes=vmem_limit)
    cp_arb = pltpu.CompilerParams(dimension_semantics=("arbitrary",),
                                  vmem_limit_bytes=vmem_limit)

    # --- stage 1: h0 = ReLU(W1(init_msg)), tiled over edge rows ------------
    h0, h = pl.pallas_call(
        _w1_kernel,
        out_shape=(jax.ShapeDtypeStruct((Ep, Hp), f32),
                   jax.ShapeDtypeStruct((Ep, Hp), bf16)),
        grid=(nE,),
        in_specs=[pl.BlockSpec((tile_e, Fp), lambda i: (i, 0)),
                  pl.BlockSpec((Fp, Hp), lambda i: (0, 0))],
        out_specs=(pl.BlockSpec((tile_e, Hp), lambda i: (i, 0)),
                   pl.BlockSpec((tile_e, Hp), lambda i: (i, 0))),
        compiler_params=cp_par,
    )(init_msg_p, W1t)

    # --- stage 2: depth-1 directed message-passing iterations --------------
    mp_call = pl.pallas_call(
        _mp_step_kernel,
        out_shape=jax.ShapeDtypeStruct((Ep, Hp), bf16),
        grid=(nE,),
        in_specs=[pl.BlockSpec((tile_e, Ep), lambda i: (i, 0)),   # AmR row tile (streamed, bf16)
                  pl.BlockSpec((Ep, Hp), lambda i: (0, 0)),       # h (resident, bf16)
                  pl.BlockSpec((tile_e, Hp), lambda i: (i, 0)),   # h0 tile (f32)
                  pl.BlockSpec((Hp, Hp), lambda i: (0, 0))],      # W2^T
        out_specs=pl.BlockSpec((tile_e, Hp), lambda i: (i, 0)),
        compiler_params=cp_par,
    )
    for _ in range(depth - 1):
        h = mp_call(AmR, h, h0, W2t)

    # --- stage 3: node aggregation + W3 + global mean pool ------------------
    out_p = pl.pallas_call(
        _readout_kernel,
        out_shape=jax.ShapeDtypeStruct((Gp, Hp), f32),
        grid=(nN,),
        in_specs=[pl.BlockSpec((tile_n, Ep), lambda i: (i, 0)),   # B_agg tile (bf16)
                  pl.BlockSpec((Ep, Hp), lambda i: (0, 0)),       # h (resident)
                  pl.BlockSpec((tile_n, Fxp), lambda i: (i, 0)),  # x tile
                  pl.BlockSpec((Fxp, Hp), lambda i: (0, 0)),      # W3 (x part)
                  pl.BlockSpec((Hp, Hp), lambda i: (0, 0)),       # W3 (v part)
                  pl.BlockSpec((1, Hp), lambda i: (0, 0)),        # b3
                  pl.BlockSpec((tile_n, Gp), lambda i: (i, 0))],  # Pool^T tile
        out_specs=pl.BlockSpec((Gp, Hp), lambda i: (0, 0)),       # accumulator
        compiler_params=cp_arb,
    )(Bagg, h, xp, W3xt, W3vt, b3p, poolT)

    return out_p[:num_graphs, :H]


# ----------------------------------------------------------------------------
# Pure-JAX reference (mirrors the PyTorch forward exactly) for validation.
# ----------------------------------------------------------------------------
def dmpnn_forward_ref(x, edge_index, revedge_index, edge_attr, batch,
                      num_graphs, params, depth=3):
    W1, W2, W3, b3 = params
    x = x.astype(jnp.float32)
    N = x.shape[0]
    src, dst = edge_index[0], edge_index[1]

    init_msg = jnp.concatenate([x[src], edge_attr.astype(jnp.float32)], axis=1)
    h0 = jax.nn.relu(init_msg @ W1.T)
    h = h0
    for _ in range(depth - 1):
        m_node = jax.ops.segment_sum(h, dst, num_segments=N)
        m = m_node[src] - h[revedge_index]
        h = jax.nn.relu(h0 + m @ W2.T)
    v_msg = jax.ops.segment_sum(h, dst, num_segments=N)
    z = jnp.concatenate([x, v_msg], axis=1)
    node_attr = jax.nn.relu(z @ W3.T + b3)
    sums = jax.ops.segment_sum(node_attr, batch, num_segments=num_graphs)
    cnts = jax.ops.segment_sum(jnp.ones((N, 1), jnp.float32), batch,
                               num_segments=num_graphs)
    return sums / cnts


if __name__ == "__main__":
    # Small deterministic batch: 4 graphs, each a 6-node cycle.
    hidden_size, node_fdim, edge_fdim, depth = 32, 16, 8, 3
    num_graphs, nodes_per_graph = 4, 6
    N = num_graphs * nodes_per_graph

    src_list, dst_list, rev_list = [], [], []
    for g in range(num_graphs):
        base = g * nodes_per_graph
        for k in range(nodes_per_graph):
            a = base + k
            b = base + (k + 1) % nodes_per_graph
            e = len(src_list)
            src_list += [a, b]
            dst_list += [b, a]
            rev_list += [e + 1, e]
    edge_index = jnp.array([src_list, dst_list], dtype=jnp.int32)    # [2, E]
    revedge_index = jnp.array(rev_list, dtype=jnp.int32)             # [E]
    E = edge_index.shape[1]                                          # 48
    batch = jnp.array(sum([[g] * nodes_per_graph for g in range(num_graphs)], []),
                      dtype=jnp.int32)                               # [N]

    key = jax.random.PRNGKey(0)
    k_x, k_e, k_w1, k_w2, k_w3, k_b3 = jax.random.split(key, 6)
    x = jax.random.normal(k_x, (N, node_fdim), dtype=jnp.float32)
    edge_attr = jax.random.normal(k_e, (E, edge_fdim), dtype=jnp.float32)

    def linear_init(k, out_f, in_f):
        bound = 1.0 / np.sqrt(in_f)
        return jax.random.uniform(k, (out_f, in_f), jnp.float32, -bound, bound)

    W1 = linear_init(k_w1, hidden_size, node_fdim + edge_fdim)
    W2 = linear_init(k_w2, hidden_size, hidden_size)
    W3 = linear_init(k_w3, hidden_size, node_fdim + hidden_size)
    b3 = jax.random.uniform(k_b3, (hidden_size,), jnp.float32,
                            -1.0 / np.sqrt(node_fdim + hidden_size),
                            1.0 / np.sqrt(node_fdim + hidden_size))
    params = (W1, W2, W3, b3)

    # Small tiles so the test exercises multi-tile grids (multiples of 16 for
    # the bf16 blocks); production defaults are tile_e=256, tile_n=128.
    out = dmpnn_forward_pallas(x, edge_index, revedge_index, edge_attr, batch,
                               num_graphs, params, depth=depth,
                               tile_e=16, tile_n=16)
    out = jax.block_until_ready(out)

    ref = dmpnn_forward_ref(x, edge_index, revedge_index, edge_attr, batch,
                            num_graphs, params, depth=depth)
    # Tolerance loosened vs. the f32 reference because h is carried in bf16
    # through the message-passing iterations (operator entries are exact).
    np.testing.assert_allclose(np.asarray(out), np.asarray(ref),
                               rtol=2e-2, atol=2e-2)
    print("KERNEL_OK")
</pallas_src>

<mosaic_0001>
module attributes {stable_mosaic.version = 11 : i64} {
  func.func @_w1_kernel(%arg0: i32, %arg1: memref<16x128xf32, #tpu.memory_space<vmem>>, %arg2: memref<128x128xf32, #tpu.memory_space<vmem>>, %arg3: memref<16x128xf32, #tpu.memory_space<vmem>>, %arg4: memref<16x128xbf16, #tpu.memory_space<vmem>>) attributes {dimension_semantics = [#tpu.dimension_semantics<parallel>], iteration_bounds = array<i64: 3>, scalar_prefetch = 0 : i64, scratch_operands = 0 : i64, tpu.core_type = #tpu.core_type<tc>, window_params = [{transform_indices = @transform_0, window_bounds = array<i64: 16, 128>}, {pipeline_mode = #tpu.pipeline_mode<synchronous>, transform_indices = @transform_1, window_bounds = array<i64: 128, 128>}, {transform_indices = @transform_2, window_bounds = array<i64: 16, 128>}, {transform_indices = @transform_3, window_bounds = array<i64: 16, 128>}]} {
    %c0 = arith.constant 0 : index
    %c0_0 = arith.constant 0 : index
    %0 = vector.load %arg1[%c0, %c0_0] : memref<16x128xf32, #tpu.memory_space<vmem>>, vector<16x128xf32>
    %c0_1 = arith.constant 0 : index
    %c0_2 = arith.constant 0 : index
    %1 = vector.load %arg2[%c0_1, %c0_2] : memref<128x128xf32, #tpu.memory_space<vmem>>, vector<128x128xf32>
    %cst = arith.constant dense<0.000000e+00> : vector<16x128xf32>
    %2 = tpu.matmul %0, %1, %cst {dimension_numbers = #tpu.dot_dimension_numbers<[1], [0], [0], [1], [0, 0, 1, 1], [], []>} : vector<16x128xf32>, vector<128x128xf32>, vector<16x128xf32> -> vector<16x128xf32>
    %cst_3 = arith.constant 0.000000e+00 : f32
    %3 = vector.broadcast %cst_3 : f32 to vector<16x128xf32>
    %4 = arith.maximumf %2, %3 : vector<16x128xf32>
    %c0_4 = arith.constant 0 : index
    %c0_5 = arith.constant 0 : index
    %5 = vector.load %arg3[%c0_4, %c0_5] : memref<16x128xf32, #tpu.memory_space<vmem>>, vector<16x128xf32>
    tpu.vector_store %arg3[%c0_4, %c0_5], %4 {strides = array<i32>} : memref<16x128xf32, #tpu.memory_space<vmem>>, vector<16x128xf32>,
    %6 = arith.truncf %4 : vector<16x128xf32> to vector<16x128xbf16>
    %c0_6 = arith.constant 0 : index
    %c0_7 = arith.constant 0 : index
    %7 = vector.load %arg4[%c0_6, %c0_7] : memref<16x128xbf16, #tpu.memory_space<vmem>>, vector<16x128xbf16>
    tpu.vector_store %arg4[%c0_6, %c0_7], %6 {strides = array<i32>} : memref<16x128xbf16, #tpu.memory_space<vmem>>, vector<16x128xbf16>,
    return
  }
  func.func @transform_0(%arg0: i32) -> (i32, i32) {
    %c0_i32 = arith.constant 0 : i32
    %c0_i32_0 = arith.constant 0 : i32
    return %arg0, %c0_i32 : i32, i32
  }
  func.func @transform_1(%arg0: i32) -> (i32, i32) {
    %c0_i32 = arith.constant 0 : i32
    %c0_i32_0 = arith.constant 0 : i32
    %c0_i32_1 = arith.constant 0 : i32
    return %c0_i32, %c0_i32_0 : i32, i32
  }
  func.func @transform_2(%arg0: i32) -> (i32, i32) {
    %c0_i32 = arith.constant 0 : i32
    %c0_i32_0 = arith.constant 0 : i32
    return %arg0, %c0_i32 : i32, i32
  }
  func.func @transform_3(%arg0: i32) -> (i32, i32) {
    %c0_i32 = arith.constant 0 : i32
    %c0_i32_0 = arith.constant 0 : i32
    return %arg0, %c0_i32 : i32, i32
  }
}

</mosaic_0001>

<llo_original>
// kernel: tpu_custom_call.1
$region0: #{tpu_custom_call.1}
  #allocation0 [shape = 'u32[]', space=smem, size = 0x4, offset = 0x4, fixed_abs, tag = 'smem constant byte address 0x4 - core index']
  #allocation1 [shape = 'u32[72,128]{1,0:T(1,128)}', space=vmem, size = 0x9000, scoped, tag = 'internal scratch']
  %s0 = inlined_call_operand.hbm [shape: f32[48,128], index: 0, kind: input, shape index: {}]
  %s1 = inlined_call_operand.hbm [shape: f32[128,128], index: 1, kind: input, shape index: {}]
  %s2 = inlined_call_operand.hbm [shape: f32[48,128], index: 2, kind: output, shape index: {0}]
  %s3 = inlined_call_operand.hbm [shape: bf16[48,128], index: 3, kind: output, shape index: {1}]
  %4 = xla_tuple %s2, %s3
  %s5 = sld [smem:[#allocation0]]
  $region57: #{tpu_custom_call.1} parent=0
    _
  %s7 = ssub.s32 1, %s5
  %s8 = scalar_select 0, %s7, %s5
  $region1: #{tpu_custom_call.1} parent=0
    #allocation2 [shape = 'u8[16384]{0}', space=vmem, size = 0x4000, scoped, tag = 'input window, operand 0']
    #allocation3 [shape = 's32[2]{0}', space=sflag, size = 0x8, scoped, tag = 'scoped memory for tpu_custom_call.1']
    #allocation4 [shape = 's32[2]{0}', space=sflag, size = 0x8, scoped, tag = 'scoped memory for tpu_custom_call.1']
    #allocation5 [shape = 'u8[65536]{0}', space=vmem, size = 0x10000, scoped, tag = 'input window, operand 1, single buffered']
    #allocation6 [shape = 's32[1]{0}', space=sflag, size = 0x4, scoped, tag = 'scoped memory for tpu_custom_call.1']
    #allocation7 [shape = 'u8[16384]{0}', space=vmem, size = 0x4000, scoped, tag = 'output window, operand 0']
    #allocation8 [shape = 'u8[8192]{0}', space=vmem, size = 0x2000, scoped, tag = 'output window, operand 1']
    #allocation9 [shape = 's32[2]{0}', space=sflag, size = 0x8, scoped, tag = 'scoped memory for tpu_custom_call.1']
    %9 = vsyncpa [#allocation3], 0
    %s10 = scalar_lea.sflag [#allocation3], 1
    %11 = vsyncpa %s10, 0
    %12 = vsyncpa [#allocation6], 0
    %13 = vsyncpa [#allocation4], 0
    %s14 = scalar_lea.sflag [#allocation4], 1
    %15 = vsyncpa %s14, 0
    %16 = vsyncpa [#allocation9], 0
    %s17 = scalar_lea.sflag [#allocation9], 1
    %18 = vsyncpa %s17, 0
    loop: start=0, step=1, limit=5
    $region2: #{tpu_custom_call.1} parent=1 // loop_pre_header
      _
    $region3: #{tpu_custom_call.1} parent=1 // loop_header
      %s20 = sphi 0, %s24
      %p21 = scmp.ge.s32.totalorder %s20, 5
      %s30 = sphi 0, %s32
      %s33 = sphi 0, %s30
      %s34 = sphi 0, %s33
      %s50 = sphi 0, %s34
      %s54 = sphi 0, %s54
      %s56 = sphi 0, %s54
      %s57 = sphi 0, %s56
      %s71 = sphi 0, %s57
      %s77 = sphi 0, %s79
      %s80 = sphi 0, %s77
      %s81 = sphi 0, %s80
      %s97 = sphi 0, %s81
      %s103 = sphi 0, %s105
      %s106 = sphi 0, %s103
      %s107 = sphi 0, %s106
      %s123 = sphi 0, %s107
    $region4: #{tpu_custom_call.1} parent=1 // loop_header_branch
      %23 = sbr.rel (%p21) target = $region8
    $region5: #{tpu_custom_call.1} parent=1 // loop_body
      %s25 = ssub.s32 %s20, 1
      %s26 = ssub.s32 %s20, 2
      %s27 = sadd.s32 %s20, 1
      %s28 = ssub.s32 %s20, %s27
      %p29 = scmp.eq.s32.totalorder %s28, 0
      %s31 = sadd.s32 %s30, 1
      %s32 = scalar_select %p29, %s30, %s31
      %p35 = pneg %p29
      %p36 = scmp.eq.s32.totalorder %s20, 2
      %p37 = por %p35, %p36
      %p38 = scmp.ne.s32.totalorder %s30, %s33
      %p39 = scmp.eq.s32.totalorder %s20, 0
      %p40 = por %p38, %p39
      %p41 = scmp.ne.s32.totalorder %s30, %s33
      %p42 = scmp.eq.s32.totalorder %s25, 2
      %p43 = por %p41, %p42
      %p44 = scmp.ne.s32.totalorder %s33, %s34
      %p45 = scmp.eq.s32.totalorder %s25, 0
      %p46 = por %p44, %p45
      %p47 = scmp.ne.s32.totalorder %s33, %s34
      %p48 = scmp.eq.s32.totalorder %s26, 2
      %p49 = por %p47, %p48
      %p51 = scmp.ne.s32.totalorder %s34, %s50
      %p52 = scmp.eq.s32.totalorder %s26, 0
      %p53 = por %p51, %p52
      %s55 = sadd.s32 %s54, 1
      %p58 = scmp.eq.s32.totalorder %s20, 2
      %p59 = scmp.ne.s32.totalorder %s54, %s56
      %p60 = scmp.eq.s32.totalorder %s20, 0
      %p61 = por %p59, %p60
      %p62 = scmp.ne.s32.totalorder %s54, %s56
      %p63 = scmp.eq.s32.totalorder %s25, 2
      %p64 = por %p62, %p63
      %p65 = scmp.ne.s32.totalorder %s56, %s57
      %p66 = scmp.eq.s32.totalorder %s25, 0
      %p67 = por %p65, %p66
      %p68 = scmp.ne.s32.totalorder %s56, %s57
      %p69 = scmp.eq.s32.totalorder %s26, 2
      %p70 = por %p68, %p69
      %p72 = scmp.ne.s32.totalorder %s57, %s71
      %p73 = scmp.eq.s32.totalorder %s26, 0
      %p74 = por %p72, %p73
      %s75 = ssub.s32 %s20, %s27
      %p76 = scmp.eq.s32.totalorder %s75, 0
      %s78 = sadd.s32 %s77, 1
      %s79 = scalar_select %p76, %s77, %s78
      %p82 = pneg %p76
      %p83 = scmp.eq.s32.totalorder %s20, 2
      %p84 = por %p82, %p83
      %p85 = scmp.ne.s32.totalorder %s77, %s80
      %p86 = scmp.eq.s32.totalorder %s20, 0
      %p87 = por %p85, %p86
      %p88 = scmp.ne.s32.totalorder %s77, %s80
      %p89 = scmp.eq.s32.totalorder %s25, 2
      %p90 = por %p88, %p89
      %p91 = scmp.ne.s32.totalorder %s80, %s81
      %p92 = scmp.eq.s32.totalorder %s25, 0
      %p93 = por %p91, %p92
      %p94 = scmp.ne.s32.totalorder %s80, %s81
      %p95 = scmp.eq.s32.totalorder %s26, 2
      %p96 = por %p94, %p95
      %p98 = scmp.ne.s32.totalorder %s81, %s97
      %p99 = scmp.eq.s32.totalorder %s26, 0
      %p100 = por %p98, %p99
      %s101 = ssub.s32 %s20, %s27
      %p102 = scmp.eq.s32.totalorder %s101, 0
      %s104 = sadd.s32 %s103, 1
      %s105 = scalar_select %p102, %s103, %s104
      %p108 = pneg %p102
      %p109 = scmp.eq.s32.totalorder %s20, 2
      %p110 = por %p108, %p109
      %p111 = scmp.ne.s32.totalorder %s103, %s106
      %p112 = scmp.eq.s32.totalorder %s20, 0
      %p113 = por %p111, %p112
      %p114 = scmp.ne.s32.totalorder %s103, %s106
      %p115 = scmp.eq.s32.totalorder %s25, 2
      %p116 = por %p114, %p115
      %p117 = scmp.ne.s32.totalorder %s106, %s107
      %p118 = scmp.eq.s32.totalorder %s25, 0
      %p119 = por %p117, %p118
      %p120 = scmp.ne.s32.totalorder %s106, %s107
      %p121 = scmp.eq.s32.totalorder %s26, 2
      %p122 = por %p120, %p121
      %p124 = scmp.ne.s32.totalorder %s107, %s123
      %p125 = scmp.eq.s32.totalorder %s26, 0
      %p126 = por %p124, %p125
      %p127 = scmp.le.s32.totalorder 1, %s20
      %p128 = scmp.lt.s32.totalorder %s20, 4
      %p129 = pnand %p127, %p128
      %p130 = pneg %p129
      // Predicated region
      $region9: #{tpu_custom_call.1} parent=5 // pred_check
        _
      $region10: #{tpu_custom_call.1} parent=5 // pred_check_branch
        %132 = sbr.rel (%p129) target = $region12
      $region11: #{tpu_custom_call.1} parent=5 // pred_region
        %s133 = ssub.s32 %s20, 1
        // Predicated region
        $region13: #{tpu_custom_call.1} parent=11 // pred_check
          %p134 = pneg %p67
        $region14: #{tpu_custom_call.1} parent=11 // pred_check_branch
          %136 = sbr.rel (%p134) target = $region16
        $region15: #{tpu_custom_call.1} parent=11 // pred_region
          %138 = vsyncadd [#allocation6], 0
          %s139 = sshll.u32 %s1, 4
          %s140 = int_to_ptr.hbm [resolvable:$true] %s139
          %s141 = sshll.u32 [#allocation5], 4
          %s142 = int_to_ptr.vmem [resolvable:$true] %s141
          %147 = dma.hbm_to_vmem [thread:$0]  %s140, 2048, %s142, [#allocation6], 128, 128, 8
        $region16: #{tpu_custom_call.1} parent=11 // pred_fallthru
          _
      $region12: #{tpu_custom_call.1} parent=5 // pred_fallthru
        _
      %p148 = scmp.lt.s32.totalorder %s20, 3
      // Predicated region
      $region17: #{tpu_custom_call.1} parent=5 // pred_check
        %p149 = pneg %p148
      $region18: #{tpu_custom_call.1} parent=5 // pred_check_branch
        %151 = sbr.rel (%p149) target = $region20
      $region19: #{tpu_custom_call.1} parent=5 // pred_region
        // Predicated region
        $region21: #{tpu_custom_call.1} parent=19 // pred_check
          %p152 = pneg %p40
        $region22: #{tpu_custom_call.1} parent=19 // pred_check_branch
          %154 = sbr.rel (%p152) target = $region24
        $region23: #{tpu_custom_call.1} parent=19 // pred_region
          %s155 = sand.u32 %s30, 1
          %s156 = scalar_lea.sflag [#allocation3], %s155
          %s157 = sand.u32 %s30, 1
          %s158 = smul.addr %s157, 16
          %s159 = scalar_lea.vmem [#allocation2], %s158
          %s160 = smul.u32 2, %s20
          %162 = vsyncadd %s156, 0
          %s163 = smul.addr %s160, 8
          %s164 = scalar_lea.hbm %s0, %s163
          %s165 = sshll.u32 %s164, 4
          %s166 = int_to_ptr.hbm [resolvable:$true] %s165
          %s167 = sshll.u32 %s159, 4
          %s168 = int_to_ptr.vmem [resolvable:$true] %s167
          %173 = dma.hbm_to_vmem [thread:$0]  %s166, 256, %s168, %s156, 128, 128, 8
        $region24: #{tpu_custom_call.1} parent=19 // pred_fallthru
          _
      $region20: #{tpu_custom_call.1} parent=5 // pred_fallthru
        _
      %p174 = scmp.le.s32.totalorder 1, %s20
      %p175 = scmp.lt.s32.totalorder %s20, 4
      %p176 = pnand %p174, %p175
      %p177 = pneg %p176
      // Predicated region
      $region25: #{tpu_custom_call.1} parent=5 // pred_check
        _
      $region26: #{tpu_custom_call.1} parent=5 // pred_check_branch
        %179 = sbr.rel (%p176) target = $region28
      $region27: #{tpu_custom_call.1} parent=5 // pred_region
        %s180 = ssub.s32 %s20, 1
        %s181 = sand.u32 %s33, 1
        %s182 = scalar_lea.sflag [#allocation3], %s181
        %s183 = sand.u32 %s33, 1
        %s184 = smul.addr %s183, 16
        %s185 = scalar_lea.vmem [#allocation2], %s184
        // Predicated region
        $region29: #{tpu_custom_call.1} parent=27 // pred_check
          %p186 = pneg %p46
        $region30: #{tpu_custom_call.1} parent=27 // pred_check_branch
          %188 = sbr.rel (%p186) target = $region32
        $region31: #{tpu_custom_call.1} parent=27 // pred_region
          %190 = dma.done %s182, 256
        $region32: #{tpu_custom_call.1} parent=27 // pred_fallthru
          _
        // Predicated region
        $region33: #{tpu_custom_call.1} parent=27 // pred_check
          %p191 = pneg %p67
        $region34: #{tpu_custom_call.1} parent=27 // pred_check_branch
          %193 = sbr.rel (%p191) target = $region36
        $region35: #{tpu_custom_call.1} parent=27 // pred_region
          %195 = dma.done [#allocation6], 2048
        $region36: #{tpu_custom_call.1} parent=27 // pred_fallthru
          _
        %s196 = sand.u32 %s33, 1
        %s197 = scalar_lea.sflag [#allocation3], %s196
        %s198 = sand.u32 %s33, 1
        %s199 = smul.addr %s198, 16
        %s200 = scalar_lea.vmem [#allocation2], %s199
        %p201 = pneg %p46
        %p202 = pneg %p43
        %p203 = pneg %p67
        %p204 = pneg %p64
        %p205 = pneg %p93
        %p206 = pneg %p90
        %s207 = sand.u32 %s80, 1
        %s208 = scalar_lea.sflag [#allocation4], %s207
        %s209 = sand.u32 %s80, 1
        %s210 = smul.addr %s209, 16
        %s211 = scalar_lea.vmem [#allocation7], %s210
        %p212 = pneg %p119
        %p213 = pneg %p116
        %s214 = sand.u32 %s106, 1
        %s215 = scalar_lea.sflag [#allocation9], %s214
        %s216 = sand.u32 %s106, 1
        %s217 = smul.addr %s216, 8
        %s218 = scalar_lea.vmem [#allocation8], %s217
        %s219 = smul.u32 2, %s25
        %s220 = smul.u32 2, %s25
        %s221 = smul.u32 2, %s25
        %v222 = vld [vmem:[%s185] sm:$0xff]
        %v223 = vld [vmem:[%s185 + $0x8] sm:$0xff]
        %v224 = vld [vmem:[#allocation5] sm:$0xff]
        %v225 = vld [vmem:[#allocation5 + $0x8] sm:$0xff]
        %v226 = vld [vmem:[#allocation5 + $0x10] sm:$0xff]
        %v227 = vld [vmem:[#allocation5 + $0x18] sm:$0xff]
        %v228 = vld [vmem:[#allocation5 + $0x20] sm:$0xff]
        %v229 = vld [vmem:[#allocation5 + $0x28] sm:$0xff]
        %v230 = vld [vmem:[#allocation5 + $0x30] sm:$0xff]
        %v231 = vld [vmem:[#allocation5 + $0x38] sm:$0xff]
        %v232 = vld [vmem:[#allocation5 + $0x40] sm:$0xff]
        %v233 = vld [vmem:[#allocation5 + $0x48] sm:$0xff]
        %v234 = vld [vmem:[#allocation5 + $0x50] sm:$0xff]
        %v235 = vld [vmem:[#allocation5 + $0x58] sm:$0xff]
        %v236 = vld [vmem:[#allocation5 + $0x60] sm:$0xff]
        %v237 = vld [vmem:[#allocation5 + $0x68] sm:$0xff]
        %v238 = vld [vmem:[#allocation5 + $0x70] sm:$0xff]
        %v239 = vld [vmem:[#allocation5 + $0x78] sm:$0xff]
        %240 = vmatpush.msra.mxu0 %v239
        %241 = vmatpush.msra.mxu0 %v238
        %242 = vmatpush.msra.mxu0 %v237
        %243 = vmatpush.msra.mxu0 %v236
        %244 = vmatpush.msra.mxu0 %v235
        %245 = vmatpush.msra.mxu0 %v234
        %246 = vmatpush.msra.mxu0 %v233
        %247 = vmatpush.msra.mxu0 %v232
        %248 = vmatpush.msra.mxu0 %v231
        %249 = vmatpush.msra.mxu0 %v230
        %250 = vmatpush.msra.mxu0 %v229
        %251 = vmatpush.msra.mxu0 %v228
        %252 = vmatpush.msra.mxu0 %v227
        %253 = vmatpush.msra.mxu0 %v226
        %254 = vmatpush.msra.mxu0 %v225
        %255 = vmatpush.msra.mxu0 %v224
        %256 = vmatmul.f32.gmra.mxu0 %v222
        %v257 = vpop.f32.mrf.mxu0
        %v258 = vadd.f32 0.0, %v257
        %259 = vmatmul.f32.gmra.mxu0 %v223
        %v260 = vpop.f32.mrf.mxu0
        %v261 = vadd.f32 0.0, %v260
        %262 = vdwg.mxu0
        %v263 = vmax.f32 %v258, 0.0
        %v264 = vmax.f32 %v261, 0.0
        %265 = vst [vmem:[%s211] sm:$0xff] %v263
        %266 = vst [vmem:[%s211 + $0x8] sm:$0xff] %v264
        %v267 = vpack.c.bf16 %v263, %v263
        %v268 = vpack.c.bf16 %v264, %v264
        %269 = vst [vmem:[%s218] sm:$0xf] %v267
        %270 = vst [vmem:[%s218 + $0x4] sm:$0xf] %v268
        %s271 = sand.u32 %s80, 1
        %s272 = scalar_lea.sflag [#allocation4], %s271
        %s273 = sand.u32 %s80, 1
        %s274 = smul.addr %s273, 16
        %s275 = scalar_lea.vmem [#allocation7], %s274
        %s276 = sand.u32 %s106, 1
        %s277 = scalar_lea.sflag [#allocation9], %s276
        %s278 = sand.u32 %s106, 1
        %s279 = smul.addr %s278, 8
        %s280 = scalar_lea.vmem [#allocation8], %s279
        // Predicated region
        $region37: #{tpu_custom_call.1} parent=27 // pred_check
          %p281 = pneg %p90
        $region38: #{tpu_custom_call.1} parent=27 // pred_check_branch
          %283 = sbr.rel (%p281) target = $region40
        $region39: #{tpu_custom_call.1} parent=27 // pred_region
          %s284 = smul.u32 2, %s25
          %286 = vsyncadd %s272, 0
          %s287 = smul.addr %s284, 8
          %s288 = scalar_lea.hbm %s2, %s287
          %s289 = sshll.u32 %s275, 4
          %s290 = int_to_ptr.vmem [resolvable:$true] %s289
          %s291 = sshll.u32 %s288, 4
          %s292 = int_to_ptr.hbm [resolvable:$true] %s291
          %297 = dma.vmem_to_hbm [thread:$0]  %s290, 256, %s292, %s272, 128, 128, 8
        $region40: #{tpu_custom_call.1} parent=27 // pred_fallthru
          _
        // Predicated region
        $region41: #{tpu_custom_call.1} parent=27 // pred_check
          %p298 = pneg %p116
        $region42: #{tpu_custom_call.1} parent=27 // pred_check_branch
          %300 = sbr.rel (%p298) target = $region44
        $region43: #{tpu_custom_call.1} parent=27 // pred_region
          %s301 = smul.u32 2, %s25
          %303 = vsyncadd %s277, 0
          %s304 = smul.addr %s301, 4
          %s305 = scalar_lea.hbm %s3, %s304
          %s306 = sshll.u32 %s280, 4
          %s307 = int_to_ptr.vmem [resolvable:$true] %s306
          %s308 = sshll.u32 %s305, 4
          %s309 = int_to_ptr.hbm [resolvable:$true] %s308
          %314 = dma.vmem_to_hbm [thread:$0]  %s307, 128, %s309, %s277, 64, 64, 4
        $region44: #{tpu_custom_call.1} parent=27 // pred_fallthru
          _
      $region28: #{tpu_custom_call.1} parent=5 // pred_fallthru
        _
      %p315 = scmp.le.s32.totalorder 2, %s20
      // Predicated region
      $region45: #{tpu_custom_call.1} parent=5 // pred_check
        %p316 = pneg %p315
      $region46: #{tpu_custom_call.1} parent=5 // pred_check_branch
        %318 = sbr.rel (%p316) target = $region48
      $region47: #{tpu_custom_call.1} parent=5 // pred_region
        %s319 = ssub.s32 %s20, 2
        // Predicated region
        $region49: #{tpu_custom_call.1} parent=47 // pred_check
          %p320 = pneg %p96
        $region50: #{tpu_custom_call.1} parent=47 // pred_check_branch
          %322 = sbr.rel (%p320) target = $region52
        $region51: #{tpu_custom_call.1} parent=47 // pred_region
          %s323 = sand.u32 %s81, 1
          %s324 = scalar_lea.sflag [#allocation4], %s323
          %s325 = sand.u32 %s81, 1
          %s326 = smul.addr %s325, 16
          %s327 = scalar_lea.vmem [#allocation7], %s326
          %329 = dma.done %s324, 256
        $region52: #{tpu_custom_call.1} parent=47 // pred_fallthru
          _
        // Predicated region
        $region53: #{tpu_custom_call.1} parent=47 // pred_check
          %p330 = pneg %p122
        $region54: #{tpu_custom_call.1} parent=47 // pred_check_branch
          %332 = sbr.rel (%p330) target = $region56
        $region55: #{tpu_custom_call.1} parent=47 // pred_region
          %s333 = sand.u32 %s107, 1
          %s334 = scalar_lea.sflag [#allocation9], %s333
          %s335 = sand.u32 %s107, 1
          %s336 = smul.addr %s335, 8
          %s337 = scalar_lea.vmem [#allocation8], %s336
          %339 = dma.done %s334, 128
        $region56: #{tpu_custom_call.1} parent=47 // pred_fallthru
          _
      $region48: #{tpu_custom_call.1} parent=5 // pred_fallthru
        _
    $region6: #{tpu_custom_call.1} parent=1 // loop_footer
      %s24 = sadd.s32 1, %s20
    $region7: #{tpu_custom_call.1} parent=1 // loop_footer_branch
      %19 = sbr.rel target = $region3
    $region8: #{tpu_custom_call.1} parent=1 // loop_exit
      _
    %340 = vsyncpa [#allocation3], 1
    %s341 = scalar_lea.sflag [#allocation3], 1
    %342 = vsyncpa %s341, 1
    %343 = vsyncpa [#allocation6], 1
    %344 = vsyncpa [#allocation4], 1
    %s345 = scalar_lea.sflag [#allocation4], 1
    %346 = vsyncpa %s345, 1
    %347 = vsyncpa [#allocation9], 1
    %s348 = scalar_lea.sflag [#allocation9], 1
    %349 = vsyncpa %s348, 1

</llo_original>
